<compile_context>
chip_gen: v7x
topology: tpu7x:2x2x1
jax: 0.10.0
libtpu: 0.0.40
codegen_flags: <defaults>
</compile_context>

<pallas_src>
import jax
import jax.numpy as jnp
from jax.experimental import pallas as pl
from jax.experimental.pallas import tpu as pltpu

B, IN, OUT = 8, 32, 16   # small synthetic shapes (logical)


def net_kernel(c_ref, x_ref, wb_ref, o_ref):
    # wb_ref: (IN + 1, OUT); rows [0:IN] = W.T, row [IN] = bias.
    # Matmul on MXU with f32 accumulate, bias add + constant scale on VPU.
    logits = jnp.dot(x_ref[...], wb_ref[:IN, :],
                     preferred_element_type=jnp.float32)
    logits = logits + wb_ref[IN:IN + 1, :]           # (B, OUT) + (1, OUT)
    o_ref[...] = (logits * c_ref[0]).astype(o_ref.dtype)


def net_forward(xb, weight_bias, constant):
    """xb: (B, IN) f32, weight_bias: (IN+1, OUT) f32 (W.T with bias as last
    row), constant: () f32 (trainable scalar). Returns (B, OUT) f32."""
    b_, in_ = xb.shape
    out = weight_bias.shape[1]
    const1d = constant.reshape(1)

    flops = 2 * b_ * in_ * out + 2 * b_ * out
    bytes_accessed = 4 * (xb.size + weight_bias.size + 1 + b_ * out)

    return pl.pallas_call(
        net_kernel,
        out_shape=jax.ShapeDtypeStruct((b_, out), jnp.float32),
        in_specs=[
            pl.BlockSpec(memory_space=pltpu.SMEM),   # constant (scalar)
            pl.BlockSpec(memory_space=pltpu.VMEM),   # xb            (B, IN)
            pl.BlockSpec(memory_space=pltpu.VMEM),   # W.T + bias    (IN+1, OUT)
        ],
        out_specs=pl.BlockSpec(memory_space=pltpu.VMEM),
        cost_estimate=pl.CostEstimate(
            flops=flops, transcendentals=0, bytes_accessed=bytes_accessed),
    )(const1d, xb, weight_bias)


if __name__ == "__main__":
    key = jax.random.PRNGKey(0)
    kx, kw, kb = jax.random.split(key, 3)

    xb = jax.random.normal(kx, (B, IN), dtype=jnp.float32)
    # deterministic parameter init (synthetic; mimics nn.Linear uniform init)
    bound = 1.0 / (IN ** 0.5)
    weight = jax.random.uniform(kw, (OUT, IN), jnp.float32, -bound, bound)
    bias = jax.random.uniform(kb, (OUT,), jnp.float32, -bound, bound)
    constant = jnp.float32(1.0)  # torch.nn.Parameter(torch.tensor(1.0))

    # One-time parameter layout: pre-transpose W and stack bias as last row.
    weight_bias = jnp.concatenate([weight.T, bias[None, :]], axis=0)  # (IN+1, OUT)

    out = net_forward(xb, weight_bias, constant)
    out = jax.block_until_ready(out)

    # reference check in plain JAX
    ref = (xb @ weight.T + bias) * constant
    assert out.shape == (B, OUT)
    assert jnp.allclose(out, ref, atol=1e-5, rtol=1e-5)
    print("KERNEL_OK")
</pallas_src>

<mosaic_0001>
module attributes {stable_mosaic.version = 11 : i64} {
  func.func @net_kernel(%arg0: memref<1xf32, #tpu.memory_space<smem>>, %arg1: memref<8x32xf32, #tpu.memory_space<vmem>>, %arg2: memref<33x16xf32, #tpu.memory_space<vmem>>, %arg3: memref<8x16xf32, #tpu.memory_space<vmem>>) attributes {dimension_semantics = [], scalar_prefetch = 0 : i64, scratch_operands = 0 : i64, tpu.core_type = #tpu.core_type<tc>} {
    %c0 = arith.constant 0 : index
    %c0_0 = arith.constant 0 : index
    %0 = vector.load %arg1[%c0, %c0_0] : memref<8x32xf32, #tpu.memory_space<vmem>>, vector<8x32xf32>
    %c0_1 = arith.constant 0 : index
    %c0_2 = arith.constant 0 : index
    %1 = vector.load %arg2[%c0_1, %c0_2] : memref<33x16xf32, #tpu.memory_space<vmem>>, vector<32x16xf32>
    %cst = arith.constant dense<0.000000e+00> : vector<8x16xf32>
    %2 = tpu.matmul %0, %1, %cst {dimension_numbers = #tpu.dot_dimension_numbers<[1], [0], [0], [1], [0, 0, 1, 1], [], []>} : vector<8x32xf32>, vector<32x16xf32>, vector<8x16xf32> -> vector<8x16xf32>
    %c32 = arith.constant 32 : index
    %c0_3 = arith.constant 0 : index
    %3 = vector.load %arg2[%c32, %c0_3] : memref<33x16xf32, #tpu.memory_space<vmem>>, vector<1x16xf32>
    %4 = vector.broadcast %3 : vector<1x16xf32> to vector<8x16xf32>
    %5 = arith.addf %2, %4 : vector<8x16xf32>
    %c0_4 = arith.constant 0 : index
    %6 = memref.load %arg0[%c0_4] : memref<1xf32, #tpu.memory_space<smem>>
    %7 = vector.broadcast %6 : f32 to vector<8x16xf32>
    %8 = arith.mulf %5, %7 : vector<8x16xf32>
    %c0_5 = arith.constant 0 : index
    %c0_6 = arith.constant 0 : index
    %9 = vector.load %arg3[%c0_5, %c0_6] : memref<8x16xf32, #tpu.memory_space<vmem>>, vector<8x16xf32>
    tpu.vector_store %arg3[%c0_5, %c0_6], %8 {strides = array<i32>} : memref<8x16xf32, #tpu.memory_space<vmem>>, vector<8x16xf32>,
    return
  }
}

</mosaic_0001>

<llo_original>
// kernel: tpu_custom_call.1
$region0: #{tpu_custom_call.1}
  #allocation0 [shape = 'u32[]', space=smem, size = 0x4, offset = 0x4, fixed_abs, tag = 'smem constant byte address 0x4 - core index']
  #allocation1 [shape = 'u32[144,128]{1,0:T(1,128)}', space=vmem, size = 0x12000, scoped, tag = 'internal scratch']
  #allocation2 [shape = 'f32[1]{0:T(128)S(6)}', space=smem, size = 0x200, scoped, tag = 'scoped memory for tpu_custom_call.1']
  %s0 = inlined_call_operand.<no memory space> [shape: f32[1], index: 0, kind: input, shape index: {}]
  %s1 = inlined_call_operand.vmem [shape: f32[8,32], index: 1, kind: input, shape index: {}]
  %s2 = inlined_call_operand.vmem [shape: f32[33,16], index: 2, kind: input, shape index: {}]
  %s3 = inlined_call_operand.hbm [shape: f32[8,16], index: 3, kind: output, shape index: {}]
  %s4 = sld [smem:[#allocation0]]
  $region22: #{tpu_custom_call.1} parent=0
    _
  %s6 = ssub.s32 1, %s4
  %s7 = scalar_select 0, %s6, %s4
  %8 = sst [smem:[#allocation2]] %s0
  $region1: #{tpu_custom_call.1} parent=0
    #allocation3 [shape = 'u8[4096]{0}', space=vmem, size = 0x1000, scoped, tag = 'output window, operand 0, single buffered']
    #allocation4 [shape = 's32[1]{0}', space=sflag, size = 0x4, scoped, tag = 'scoped memory for tpu_custom_call.1']
    %9 = vsyncpa [#allocation4], 0
    // Predicated region
    $region2: #{tpu_custom_call.1} parent=1 // pred_check
      _
    $region3: #{tpu_custom_call.1} parent=1 // pred_check_branch
      %11 = sbr.rel (0) target = $region5
    $region4: #{tpu_custom_call.1} parent=1 // pred_region
      _
    $region5: #{tpu_custom_call.1} parent=1 // pred_fallthru
      _
    // Predicated region
    $region6: #{tpu_custom_call.1} parent=1 // pred_check
      _
    $region7: #{tpu_custom_call.1} parent=1 // pred_check_branch
      %13 = sbr.rel (0) target = $region9
    $region8: #{tpu_custom_call.1} parent=1 // pred_region
      _
    $region9: #{tpu_custom_call.1} parent=1 // pred_fallthru
      _
    // Predicated region
    $region10: #{tpu_custom_call.1} parent=1 // pred_check
      _
    $region11: #{tpu_custom_call.1} parent=1 // pred_check_branch
      %15 = sbr.rel (0) target = $region13
    $region12: #{tpu_custom_call.1} parent=1 // pred_region
      _
    $region13: #{tpu_custom_call.1} parent=1 // pred_fallthru
      _
    %v16 = vld [vmem:[%s1] sm:$0xff]
    %v17 = vld [vmem:[%s2] sm:$0xff]
    %v18 = vld [vmem:[%s2 + $0x8] sm:$0xff]
    %v19 = vld [vmem:[%s2 + $0x10] sm:$0xff]
    %v20 = vld [vmem:[%s2 + $0x18] sm:$0xff]
    %v21 = vld [vmem:[%s2 + $0x20] sm:$0x1]
    %v22 = vlaneseq
    %v23 = vshrl.u32 %v22, 7
    %v24 = vsub.s32 0, %v23
    %v25 = vrot.slane %v21, %v24
    %vm26 = vcmask 261120
    %v28 = vsel %vm26, %v16, 0
    %30 = vmatprep.subr.mxu0 0.0
    %31 = vmatpush1.msra.mxu0 %v17
    %32 = vmatprep.subr.mxu0 0.0
    %33 = vmatpush1.msra.mxu0 %v18
    %34 = vmatprep.subr.mxu0 0.0
    %35 = vmatpush1.msra.mxu0 %v19
    %36 = vmatprep.subr.mxu0 0.0
    %37 = vmatpush1.msra.mxu0 %v20
    %38 = vmatprep.subr.mxu0 0.0
    %39 = vmatpush1.msra.mxu0 0.0
    %40 = vmatprep.subr.mxu0 0.0
    %41 = vmatpush1.msra.mxu0 0.0
    %42 = vmatprep.subr.mxu0 0.0
    %43 = vmatpush1.msra.mxu0 0.0
    %44 = vmatprep.subr.mxu0 0.0
    %45 = vmatpush1.msra.mxu0 0.0
    %46 = vmatprep.subr.mxu0 0.0
    %47 = vmatpush1.msra.mxu0 0.0
    %48 = vmatprep.subr.mxu0 0.0
    %49 = vmatpush1.msra.mxu0 0.0
    %50 = vmatprep.subr.mxu0 0.0
    %51 = vmatpush1.msra.mxu0 0.0
    %52 = vmatprep.subr.mxu0 0.0
    %53 = vmatpush1.msra.mxu0 0.0
    %54 = vmatprep.subr.mxu0 0.0
    %55 = vmatpush1.msra.mxu0 0.0
    %56 = vmatprep.subr.mxu0 0.0
    %57 = vmatpush1.msra.mxu0 0.0
    %58 = vmatprep.subr.mxu0 0.0
    %59 = vmatpush1.msra.mxu0 0.0
    %60 = vmatprep.subr.mxu0 0.0
    %61 = vmatpush1.msra.mxu0 0.0
    %62 = vmatprep.subr.mxu0 0.0
    %63 = vmatpush1.msra.mxu0 0.0
    %64 = vmatprep.subr.mxu0 0.0
    %65 = vmatpush1.msra.mxu0 0.0
    %66 = vmatprep.subr.mxu0 0.0
    %67 = vmatpush1.msra.mxu0 0.0
    %68 = vmatprep.subr.mxu0 0.0
    %69 = vmatpush1.msra.mxu0 0.0
    %70 = vmatprep.subr.mxu0 0.0
    %71 = vmatpush1.msra.mxu0 0.0
    %72 = vmatprep.subr.mxu0 0.0
    %73 = vmatpush1.msra.mxu0 0.0
    %74 = vmatprep.subr.mxu0 0.0
    %75 = vmatpush1.msra.mxu0 0.0
    %76 = vmatprep.subr.mxu0 0.0
    %77 = vmatpush1.msra.mxu0 0.0
    %78 = vmatprep.subr.mxu0 0.0
    %79 = vmatpush1.msra.mxu0 0.0
    %80 = vmatprep.subr.mxu0 0.0
    %81 = vmatpush1.msra.mxu0 0.0
    %82 = vmatprep.subr.mxu0 0.0
    %83 = vmatpush1.msra.mxu0 0.0
    %84 = vmatprep.subr.mxu0 0.0
    %85 = vmatpush1.msra.mxu0 0.0
    %86 = vmatprep.subr.mxu0 0.0
    %87 = vmatpush1.msra.mxu0 0.0
    %88 = vmatprep.subr.mxu0 0.0
    %89 = vmatpush1.msra.mxu0 0.0
    %90 = vmatprep.subr.mxu0 0.0
    %91 = vmatpush1.msra.mxu0 0.0
    %92 = vmatprep.subr.mxu0 0.0
    %93 = vmatpush1.msra.mxu0 0.0
    %94 = vmatprep.mubr.f32.mxu0 0.0
    %95 = vmatmul.mubr.f32.gmra.mrb[0].mxu0 %v28
    %v96 = vpop.f32.mrb[0].mxu0
    %v97 = vadd.f32 %v25, %v96
    %v98 = vpop.f32.mrb[0].mxu0
    %99 = vdwg.mxu0
    %s100 = sld [smem:[#allocation2]]
    %v101 = vstv %s100
    %v102 = vmul.f32 %v97, %v101
    %vm103 = vcmask 130048
    %104 = vst.msk [vmem:[#allocation3] sm:$0xff] %vm103, %v102
    // Predicated region
    $region14: #{tpu_custom_call.1} parent=1 // pred_check
      _
    $region15: #{tpu_custom_call.1} parent=1 // pred_check_branch
      %106 = sbr.rel (0) target = $region17
    $region16: #{tpu_custom_call.1} parent=1 // pred_region
      %s108 = ssub.s32 128, 128
      %109 = vsyncadd [#allocation4], %s108
      %s111 = sshll.u32 [#allocation3], 4
      %s112 = int_to_ptr.vmem [resolvable:$true] %s111
      %114 = dma.vmem_to_hbm [thread:$0]  %s112, 128, %s3, [#allocation4]
    $region17: #{tpu_custom_call.1} parent=1 // pred_fallthru
      _
    // Predicated region
    $region18: #{tpu_custom_call.1} parent=1 // pred_check
      _
    $region19: #{tpu_custom_call.1} parent=1 // pred_check_branch
      %116 = sbr.rel (0) target = $region21
    $region20: #{tpu_custom_call.1} parent=1 // pred_region
      %117 = dma.done [#allocation4], 128
    $region21: #{tpu_custom_call.1} parent=1 // pred_fallthru
      _
    %118 = vsyncpa [#allocation4], 1

</llo_original>
